<compile_context>
chip_gen: v5e
topology: v5e:2x2
jax: 0.10.0
libtpu: 0.0.40
codegen_flags: <defaults>
</compile_context>

<pallas_src>
import math

import jax
import jax.numpy as jnp
from jax.experimental import pallas as pl
from jax.experimental.pallas import tpu as pltpu


def _build_pe_table(d_model: int, max_len: int = 1000) -> jnp.ndarray:
    """Exactly reproduces predictor.py's registered buffer `pe` (max_len, d_model).

    NOTE: predictor.py uses div_term = exp(arange(d_pairs) * (-ln(1e4)/d_model))
    (NOT the textbook arange(0, d_model, 2) recipe); we mirror it verbatim.
    """
    position = jnp.arange(max_len, dtype=jnp.float32)[:, None]          # (max_len, 1)
    d_pairs = (d_model + 1) // 2
    div_term = jnp.exp(
        jnp.arange(d_pairs, dtype=jnp.float32) * (-math.log(10000.0) / d_model)
    )                                                                    # (d_pairs,)
    position_enc = position * div_term                                   # (max_len, d_pairs)
    n_even = d_model // 2 + d_model % 2
    n_odd = d_model // 2
    pe = jnp.zeros((max_len, d_model), dtype=jnp.float32)
    pe = pe.at[:, 0::2].set(jnp.sin(position_enc[:, :n_even]))
    pe = pe.at[:, 1::2].set(jnp.cos(position_enc[:, :n_odd]))
    return pe


def _pe_add_kernel(x_ref, pe_ref, o_ref):
    # x_ref/o_ref: (TB, TR, C); pe_ref: (TR, C). Pure VPU add, accumulated in f32
    # (matches torch's type promotion against the fp32 `pe` buffer).
    x = x_ref[...].astype(jnp.float32)
    pe = pe_ref[...].astype(jnp.float32)
    o_ref[...] = (x + pe[None, :, :]).astype(o_ref.dtype)


_DEFAULT_BLOCK_BYTES = 4 * 1024 * 1024   # ~4 MiB of x per block (HBM-roofline class)
_VMEM_LIMIT_BYTES = 48 * 1024 * 1024     # cap; safe on v5e/v6e (128 MiB) and v7x (64 MiB)


def _choose_tiles(B, R, C, itemsizes, block_bytes):
    """Pick (TB, TR): ~block_bytes per x block, sublane-aligned, no divisibility needed."""
    sublane = max(32 // it for it in itemsizes)          # 8 (f32) / 16 (bf16) / 32 (i8)
    row_bytes = C * max(itemsizes)
    rows_want = max(1, block_bytes // row_bytes)
    if rows_want >= R:
        # One batch element does not fill the byte budget: tile the batch axis too.
        TR = R
        TB = min(B, max(1, block_bytes // max(1, R * row_bytes)))
    else:
        TR = min(R, max(sublane, (rows_want // sublane) * sublane))
        TB = 1
    return TB, TR, sublane


def positional_encoding_forward(x, pe_full, *, block_bytes=_DEFAULT_BLOCK_BYTES):
    """x: (B, S, D); pe_full: (max_len, D) fp32 buffer. Returns x + pe[:S]."""
    B, S, D = x.shape
    out_dtype = jnp.promote_types(x.dtype, pe_full.dtype)

    # --- Lane-dense view ------------------------------------------------------
    # The add is elementwise, so (S, D) can be regrouped into 128-lane rows
    # whenever S*D % 128 == 0. Full-lane stores (vst) instead of masked vst.msk.
    if (S * D) % 128 == 0:
        C = 128
        R = (S * D) // C
        x_v = x.reshape(B, R, C)
    else:
        # Fallback: ragged last dim (masked stores), still correct.
        C, R = D, S
        x_v = x

    itemsizes = (jnp.dtype(x.dtype).itemsize,
                 jnp.dtype(pe_full.dtype).itemsize,
                 jnp.dtype(out_dtype).itemsize)
    TB, TR, sublane = _choose_tiles(B, R, C, itemsizes, block_bytes)

    # --- pe view (avoid a per-call slice/copy when tile alignment allows) ------
    if TR % sublane == 0:
        # Blocks are tiling-aligned, so the *unsliced* pe table can be handed to
        # the kernel; index_map only ever requests rows < cdiv(R, TR)*TR and any
        # ragged tail is padded by the pipeline (matching x/out rows are masked).
        if C == 128:
            if pe_full.size % 128 == 0:
                pe_v = pe_full.reshape(pe_full.size // 128, 128)
            else:
                pe_v = pe_full[:S].reshape(R, C)
        else:
            pe_v = pe_full
    else:
        # TR == R and R is not sublane-aligned: pe's block must equal its full
        # row extent, so slice to exactly the first S positions.
        pe_v = pe_full[:S].reshape(R, C) if C == 128 else pe_full[:S]

    n_s = pl.cdiv(R, TR)
    n_b = pl.cdiv(B, TB)

    out_v = pl.pallas_call(
        _pe_add_kernel,
        out_shape=jax.ShapeDtypeStruct((B, R, C), out_dtype),
        grid_spec=pltpu.PrefetchScalarGridSpec(
            num_scalar_prefetch=0,
            # Row-tile axis OUTER, batch-tile axis INNER: the pe block index only
            # changes n_s times, so pe is not re-DMA'd across the batch loop.
            grid=(n_s, n_b),
            in_specs=[
                pl.BlockSpec((TB, TR, C), lambda s, b: (b, s, 0)),
                pl.BlockSpec((TR, C), lambda s, b: (s, 0)),
            ],
            out_specs=pl.BlockSpec((TB, TR, C), lambda s, b: (b, s, 0)),
        ),
        compiler_params=pltpu.CompilerParams(
            # Both axes are independent -> v7x can shard across its two cores.
            dimension_semantics=("parallel", "parallel"),
            # Raise the scoped-VMEM cap (v5e default is only 16 MiB) so the
            # 2x(x)+2x(out)+2x(pe) plan (~10-24 MiB at 4 MiB blocks) fits on all
            # generations, while staying well under v7x's 64 MiB physical VMEM.
            vmem_limit_bytes=_VMEM_LIMIT_BYTES,
        ),
    )(x_v, pe_v)

    # TODO(synk): if the caller can donate x, add input_output_aliases={0: 0} to
    # avoid allocating a second activation-sized HBM buffer.
    return out_v.reshape(B, S, D)


if __name__ == "__main__":
    MAX_LEN = 1000

    def _check(B, S, D, key, **kw):
        x = jax.random.normal(key, (B, S, D), dtype=jnp.float32)
        pe_full = _build_pe_table(D, MAX_LEN)
        out = jax.block_until_ready(positional_encoding_forward(x, pe_full, **kw))
        ref = x + pe_full[None, :S, :]
        assert out.shape == (B, S, D) and out.dtype == ref.dtype
        assert jnp.allclose(out, ref, atol=1e-6, rtol=1e-6), (B, S, D)

    k0, k1, k2, k3 = jax.random.split(jax.random.PRNGKey(0), 4)

    # Primary small example consistent with the module (batch=2, seq=8, d_model=32).
    _check(2, 8, 32, k0)
    # Row-tiled lane-dense path with a ragged row edge (forces a multi-step grid).
    _check(3, 40, 48, k1, block_bytes=4096)
    # Batch-tiled path with a ragged batch edge.
    _check(3, 8, 32, k2, block_bytes=2048)
    # Fallback path: S*D not a multiple of 128 (masked-lane stores).
    _check(2, 9, 40, k3)

    print("KERNEL_OK")
</pallas_src>

<mosaic_0001>
module attributes {stable_mosaic.version = 11 : i64} {
  func.func @_pe_add_kernel(%arg0: i32, %arg1: i32, %arg2: memref<2x2x128xf32, #tpu.memory_space<vmem>>, %arg3: memref<2x128xf32, #tpu.memory_space<vmem>>, %arg4: memref<2x2x128xf32, #tpu.memory_space<vmem>>) attributes {dimension_semantics = [#tpu.dimension_semantics<parallel>, #tpu.dimension_semantics<parallel>], iteration_bounds = array<i64: 1, 1>, scalar_prefetch = 0 : i64, scratch_operands = 0 : i64, tpu.core_type = #tpu.core_type<tc>, window_params = [{transform_indices = @transform_0, window_bounds = array<i64: 2, 2, 128>}, {transform_indices = @transform_1, window_bounds = array<i64: 2, 128>}, {transform_indices = @transform_2, window_bounds = array<i64: 2, 2, 128>}]} {
    %c0 = arith.constant 0 : index
    %c0_0 = arith.constant 0 : index
    %c0_1 = arith.constant 0 : index
    %0 = vector.load %arg2[%c0, %c0_0, %c0_1] : memref<2x2x128xf32, #tpu.memory_space<vmem>>, vector<2x2x128xf32>
    %c0_2 = arith.constant 0 : index
    %c0_3 = arith.constant 0 : index
    %1 = vector.load %arg3[%c0_2, %c0_3] : memref<2x128xf32, #tpu.memory_space<vmem>>, vector<2x128xf32>
    %2 = vector.shape_cast %1 : vector<2x128xf32> to vector<1x2x128xf32>
    %3 = vector.broadcast %2 : vector<1x2x128xf32> to vector<2x2x128xf32>
    %4 = arith.addf %0, %3 : vector<2x2x128xf32>
    %c0_4 = arith.constant 0 : index
    %c0_5 = arith.constant 0 : index
    %c0_6 = arith.constant 0 : index
    %5 = vector.load %arg4[%c0_4, %c0_5, %c0_6] : memref<2x2x128xf32, #tpu.memory_space<vmem>>, vector<2x2x128xf32>
    tpu.vector_store %arg4[%c0_4, %c0_5, %c0_6], %4 {strides = array<i32>} : memref<2x2x128xf32, #tpu.memory_space<vmem>>, vector<2x2x128xf32>,
    return
  }
  func.func @transform_0(%arg0: i32, %arg1: i32) -> (i32, i32, i32) {
    %c0_i32 = arith.constant 0 : i32
    %c0_i32_0 = arith.constant 0 : i32
    return %arg1, %arg0, %c0_i32 : i32, i32, i32
  }
  func.func @transform_1(%arg0: i32, %arg1: i32) -> (i32, i32) {
    %c0_i32 = arith.constant 0 : i32
    %c0_i32_0 = arith.constant 0 : i32
    return %arg0, %c0_i32 : i32, i32
  }
  func.func @transform_2(%arg0: i32, %arg1: i32) -> (i32, i32, i32) {
    %c0_i32 = arith.constant 0 : i32
    %c0_i32_0 = arith.constant 0 : i32
    return %arg1, %arg0, %c0_i32 : i32, i32, i32
  }
}

</mosaic_0001>

<llo_original>
// kernel: tpu_custom_call.1
$region0: #{tpu_custom_call.1}
  #allocation0 [shape = 'u32[]', space=smem, size = 0x4, offset = 0x4, fixed_abs, tag = 'smem constant byte address 0x4 - core index']
  #allocation1 [shape = 'u32[72,128]{1,0:T(1,128)}', space=vmem, size = 0x9000, scoped, tag = 'internal scratch']
  %s0 = inlined_call_operand.hbm [shape: f32[2,2,128], index: 0, kind: input, shape index: {}]
  %s1 = inlined_call_operand.hbm [shape: f32[2,128], index: 1, kind: input, shape index: {}]
  %s2 = inlined_call_operand.hbm [shape: f32[2,2,128], index: 2, kind: output, shape index: {}]
  %s3 = sld [smem:[#allocation0]]
  $region26: #{tpu_custom_call.1} parent=0
    _
  %s5 = ssub.s32 1, %s3
  %s6 = scalar_select 0, %s5, %s3
  $region1: #{tpu_custom_call.1} parent=0
    #allocation2 [shape = 'u8[2048]{0}', space=vmem, size = 0x800, scoped, tag = 'input window, operand 0, single buffered']
    #allocation3 [shape = 's32[1]{0}', space=sflag, size = 0x4, scoped, tag = 'scoped memory for tpu_custom_call.1']
    #allocation4 [shape = 's32[1]{0}', space=sflag, size = 0x4, scoped, tag = 'scoped memory for tpu_custom_call.1']
    #allocation5 [shape = 'u8[1024]{0}', space=vmem, size = 0x400, scoped, tag = 'input window, operand 1, single buffered']
    #allocation6 [shape = 's32[1]{0}', space=sflag, size = 0x4, scoped, tag = 'scoped memory for tpu_custom_call.1']
    #allocation7 [shape = 'u8[2048]{0}', space=vmem, size = 0x800, scoped, tag = 'output window, operand 0, single buffered']
    %7 = vsyncpa [#allocation3], 0
    %8 = vsyncpa [#allocation6], 0
    %9 = vsyncpa [#allocation4], 0
    // Predicated region
    $region2: #{tpu_custom_call.1} parent=1 // pred_check
      _
    $region3: #{tpu_custom_call.1} parent=1 // pred_check_branch
      %11 = sbr.rel (0) target = $region5
    $region4: #{tpu_custom_call.1} parent=1 // pred_region
      %13 = vsyncadd [#allocation3], 0
      %s14 = sshll.u32 %s0, 4
      %s15 = int_to_ptr.hbm [resolvable:$true] %s14
      %s16 = sshll.u32 [#allocation2], 4
      %s17 = int_to_ptr.vmem [resolvable:$true] %s16
      %22 = dma.hbm_to_vmem [thread:$0]  %s15, 64, %s17, [#allocation3], 32, 32, 2
    $region5: #{tpu_custom_call.1} parent=1 // pred_fallthru
      _
    // Predicated region
    $region6: #{tpu_custom_call.1} parent=1 // pred_check
      _
    $region7: #{tpu_custom_call.1} parent=1 // pred_check_branch
      %24 = sbr.rel (0) target = $region9
    $region8: #{tpu_custom_call.1} parent=1 // pred_region
      %26 = vsyncadd [#allocation6], 0
      %s28 = sshll.u32 %s1, 4
      %s29 = int_to_ptr.hbm [resolvable:$true] %s28
      %s30 = sshll.u32 [#allocation5], 4
      %s31 = int_to_ptr.vmem [resolvable:$true] %s30
      %33 = dma.hbm_to_vmem [thread:$0]  %s29, 32, %s31, [#allocation6]
    $region9: #{tpu_custom_call.1} parent=1 // pred_fallthru
      _
    // Predicated region
    $region10: #{tpu_custom_call.1} parent=1 // pred_check
      _
    $region11: #{tpu_custom_call.1} parent=1 // pred_check_branch
      %35 = sbr.rel (0) target = $region13
    $region12: #{tpu_custom_call.1} parent=1 // pred_region
      %37 = dma.done [#allocation3], 64
    $region13: #{tpu_custom_call.1} parent=1 // pred_fallthru
      _
    // Predicated region
    $region14: #{tpu_custom_call.1} parent=1 // pred_check
      _
    $region15: #{tpu_custom_call.1} parent=1 // pred_check_branch
      %39 = sbr.rel (0) target = $region17
    $region16: #{tpu_custom_call.1} parent=1 // pred_region
      %41 = dma.done [#allocation6], 32
    $region17: #{tpu_custom_call.1} parent=1 // pred_fallthru
      _
    %v42 = vld [vmem:[#allocation2] sm:$0x3]
    %v43 = vld [vmem:[#allocation2 + $0x2] sm:$0x3]
    %v44 = vld [vmem:[#allocation5] sm:$0x3]
    %v45 = vadd.f32 %v42, %v44
    %v46 = vadd.f32 %v43, %v44
    %47 = vst [vmem:[#allocation7] sm:$0x3] %v45
    %48 = vst [vmem:[#allocation7 + $0x2] sm:$0x3] %v46
    // Predicated region
    $region18: #{tpu_custom_call.1} parent=1 // pred_check
      _
    $region19: #{tpu_custom_call.1} parent=1 // pred_check_branch
      %50 = sbr.rel (0) target = $region21
    $region20: #{tpu_custom_call.1} parent=1 // pred_region
      %52 = vsyncadd [#allocation4], 0
      %s53 = sshll.u32 [#allocation7], 4
      %s54 = int_to_ptr.vmem [resolvable:$true] %s53
      %s55 = sshll.u32 %s2, 4
      %s56 = int_to_ptr.hbm [resolvable:$true] %s55
      %61 = dma.vmem_to_hbm [thread:$0]  %s54, 64, %s56, [#allocation4], 32, 32, 2
    $region21: #{tpu_custom_call.1} parent=1 // pred_fallthru
      _
    // Predicated region
    $region22: #{tpu_custom_call.1} parent=1 // pred_check
      _
    $region23: #{tpu_custom_call.1} parent=1 // pred_check_branch
      %63 = sbr.rel (0) target = $region25
    $region24: #{tpu_custom_call.1} parent=1 // pred_region
      %65 = dma.done [#allocation4], 64
    $region25: #{tpu_custom_call.1} parent=1 // pred_fallthru
      _
    %66 = vsyncpa [#allocation3], 1
    %67 = vsyncpa [#allocation6], 1
    %68 = vsyncpa [#allocation4], 1

</llo_original>
